<compile_context>
chip_gen: v5e
topology: v5e:2x2
jax: 0.10.0
libtpu: 0.0.40
codegen_flags: <defaults>
</compile_context>

<pallas_src>
import jax
import jax.numpy as jnp
from jax.experimental import pallas as pl
from jax.experimental.pallas import tpu as pltpu

EPS = 1e-5  # PyTorch LayerNorm default eps


# --------------------------------------------------------------------------
# Small helpers: per-generation VMEM budget + tile picking.
# --------------------------------------------------------------------------
def _scoped_vmem_budget():
    """Scoped-VMEM budget (bytes) used for tile sizing and vmem_limit_bytes.
    ~half of physical VMEM (v5e/v6e: 128 MiB -> 64 MiB, v7x: 64 MiB -> 32 MiB),
    conservative fallback if the query is unavailable."""
    cap = None
    try:
        info = pltpu.get_tpu_info()
        for name in ("vmem_capacity_bytes", "vmem_size_bytes", "vmem_bytes"):
            v = getattr(info, name, None)
            if v:
                cap = int(v)
                break
    except Exception:
        cap = None
    if cap is None:
        cap = 64 << 20  # assume v7x-sized physical VMEM if unknown
    return max(16 << 20, min(cap // 2, 96 << 20))


def _pick_tile(total, max_tile, quantum):
    """Largest tile <= max_tile (multiple of `quantum`); prefers an even
    divisor of `total` (lane-dense, no masked edge), otherwise allows a ragged
    last block (Pallas masks it)."""
    if total <= max_tile:
        return total
    t = max(quantum, (max_tile // quantum) * quantum)
    for cand in range(t, max(quantum, t - 32 * quantum) - 1, -quantum):
        if total % cand == 0:
            return cand
    return t


# --------------------------------------------------------------------------
# One-time (load-time) parameter prep.
# --------------------------------------------------------------------------
def prepare_params(params):
    """Permute w2's columns (and b2) so the controller's flat output is laid
    out as (C, E) row-major -> it reshapes straight to (B, C, E) == W_b.T,
    eliminating the runtime mapping transpose. Also cast w2 to bf16 (it is the
    kernel's dominant HBM stream)."""
    E = params["emb_ln_g"].shape[0]
    C = params["feat_ln_g"].shape[0]
    w2 = params["w2"]                                    # (E, E*C), cols flattened (E, C)
    b2 = params["b2"]
    w2_ce = w2.reshape(E, E, C).swapaxes(1, 2).reshape(E, C * E)
    b2_ce = b2.reshape(E, C).T.reshape(C * E)
    prepped = dict(params)
    prepped["w2_ce_bf16"] = w2_ce.astype(jnp.bfloat16)
    prepped["b2_ce"] = b2_ce.astype(jnp.float32)
    return prepped


# --------------------------------------------------------------------------
# Hoisted controller front-end (tiny, one-shot, plain XLA glue):
#   h = ReLU(LayerNorm_E(emb) @ w1 + b1)  -> bf16 (B, E)
# Dropout is identity in eval mode.
# --------------------------------------------------------------------------
def controller_hidden(lang_emb, g, b, w1, b1):
    x = lang_emb.astype(jnp.float32)
    mu = jnp.mean(x, axis=-1, keepdims=True)
    var = jnp.mean((x - mu) ** 2, axis=-1, keepdims=True)
    xn = (x - mu) * jax.lax.rsqrt(var + EPS) * g + b
    h = jnp.maximum(xn @ w1 + b1, 0.0)
    return h.astype(jnp.bfloat16)                        # (B, E)


# --------------------------------------------------------------------------
# Kernel 1: controller back-end — ReLU(h @ w2 + b2), w2 streamed in bf16.
# Grid over tiles of the output dimension (C*E); h is a tiny resident bf16
# input.  No cross-iteration state -> the tile axis is "parallel" (megacore).
# --------------------------------------------------------------------------
def controller_kernel(h_ref, w2_ref, b2_ref, out_ref):
    m = jnp.dot(h_ref[...], w2_ref[...],
                preferred_element_type=jnp.float32) + b2_ref[...]
    out_ref[...] = jnp.maximum(m, 0.0).astype(out_ref.dtype)   # (B, tn) bf16


def run_controller(h_bf16, w2_ce_bf16, b2_ce, *, tn=None, vmem_budget=None):
    B, E = h_bf16.shape
    EC = w2_ce_bf16.shape[1]
    if vmem_budget is None:
        vmem_budget = _scoped_vmem_budget()
    if tn is None:
        # Live VMEM per tile width tn:
        #   2 * (E*tn) bf16  (w2, double-buffered)      = 4*E*tn bytes
        # + 2 * (B*tn) bf16  (out, double-buffered)     = 4*B*tn
        # + 2 * tn f32       (b2)                       = 8*tn
        # + small residents (h).
        per_col = 4 * E + 4 * B + 8
        tn_max = max(128, int(vmem_budget * 0.7) // per_col)
        tn_max = min(tn_max, 8192)
        tn = _pick_tile(EC, tn_max, 128)
    grid = (pl.cdiv(EC, tn),)
    # TODO(synk): consider pipeline_mode=pl.Buffered(3) on the w2 spec if
    # profiling shows DMA gaps between steps (cheap to sweep once VMEM allows).
    return pl.pallas_call(
        controller_kernel,
        out_shape=jax.ShapeDtypeStruct((B, EC), jnp.bfloat16),
        grid_spec=pltpu.PrefetchScalarGridSpec(
            num_scalar_prefetch=0,
            grid=grid,
            in_specs=[
                pl.BlockSpec((B, E), lambda n: (0, 0)),        # h    (resident bf16)
                pl.BlockSpec((E, tn), lambda n: (0, n)),       # w2 tile (bf16 stream)
                pl.BlockSpec((1, tn), lambda n: (0, n)),       # b2 tile
            ],
            out_specs=pl.BlockSpec((B, tn), lambda n: (0, n)),
        ),
        compiler_params=pltpu.CompilerParams(
            dimension_semantics=("parallel",),                 # no carry -> megacore OK
            vmem_limit_bytes=int(vmem_budget)),
    )(h_bf16, w2_ce_bf16, b2_ce.reshape(1, EC))


# --------------------------------------------------------------------------
# Kernel 2: fusion — per batch element: LayerNorm over C, then (tT,C)@(C,E).
# Grid = (B, T-tiles); W_b (the per-batch mapping, bf16) stays resident across
# the T axis.  Both axes are parallel (no cross-iteration state).
# --------------------------------------------------------------------------
def fusion_kernel(feat_ref, g_ref, b_ref, map_ref, out_ref):
    x = feat_ref[0].astype(jnp.float32)                        # (tT, C)
    mu = jnp.mean(x, axis=-1, keepdims=True)
    var = jnp.mean(x * x, axis=-1, keepdims=True) - mu * mu    # single-pass variance
    xn = (x - mu) * jax.lax.rsqrt(var + EPS)
    xn = xn * g_ref[...] + b_ref[...]                          # (tT, C) f32
    w = map_ref[0]                                             # (C, E) bf16 == W_b.T
    y = jnp.dot(xn.astype(jnp.bfloat16), w,
                preferred_element_type=jnp.float32)            # (tT, E)
    out_ref[0] = y.astype(out_ref.dtype)


def run_fusion(feat_btc, g_c, b_c, mapping_bce, *, tt=None, out_dtype=None,
               vmem_budget=None):
    B, T, C = feat_btc.shape
    E = mapping_bce.shape[-1]
    if out_dtype is None:
        out_dtype = feat_btc.dtype           # matches PyTorch (output type_as(feat))
    if vmem_budget is None:
        vmem_budget = _scoped_vmem_budget()
    in_isz = jnp.dtype(feat_btc.dtype).itemsize
    out_isz = jnp.dtype(out_dtype).itemsize
    quantum = 16 if min(in_isz, out_isz) < 4 else 8            # bf16 sublane packing
    if tt is None:
        fixed = 2 * C * E * 2                                  # W_b bf16, double-buffered
        per_row = 2 * (C * in_isz + E * out_isz)               # feat + out, double-buffered
        tt_max = (int(vmem_budget * 0.7) - fixed) // per_row
        tt_max = max(quantum, min(tt_max, 1024))
        tt = _pick_tile(T, tt_max, quantum)
    grid = (B, pl.cdiv(T, tt))
    # NOTE: at realistic sizes C and E are multiples of 128 (lane-dense loads
    # and stores); the toy test shapes below use full-extent blocks so they
    # remain legal.
    return pl.pallas_call(
        fusion_kernel,
        out_shape=jax.ShapeDtypeStruct((B, T, E), out_dtype),
        grid_spec=pltpu.PrefetchScalarGridSpec(
            num_scalar_prefetch=0,
            grid=grid,
            in_specs=[
                pl.BlockSpec((1, tt, C), lambda b, t: (b, t, 0)),  # feat T-tile
                pl.BlockSpec((1, C), lambda b, t: (0, 0)),         # gamma
                pl.BlockSpec((1, C), lambda b, t: (0, 0)),         # beta
                pl.BlockSpec((1, C, E), lambda b, t: (b, 0, 0)),   # W_b resident over T
            ],
            out_specs=pl.BlockSpec((1, tt, E), lambda b, t: (b, t, 0)),
        ),
        compiler_params=pltpu.CompilerParams(
            dimension_semantics=("parallel", "parallel"),
            vmem_limit_bytes=int(vmem_budget)),
    )(feat_btc, g_c.reshape(1, C), b_c.reshape(1, C), mapping_bce)


# --------------------------------------------------------------------------
# Full forward.
# --------------------------------------------------------------------------
def lvpg_forward_btc(feat_btc, tgt_lang_toks, params, *, out_dtype=None):
    """Transpose-free entry point: feat is (B, T, C), returns (B, T, E)."""
    B, T, C = feat_btc.shape
    budget = _scoped_vmem_budget()
    # Token embedding lookup (glue). Per-batch mapping equals per-unique-token
    # mapping in the PyTorch loop, since it depends only on the token value.
    lang_emb = params["embed_tokens"][tgt_lang_toks]                       # (B, E)
    h_bf16 = controller_hidden(lang_emb, params["emb_ln_g"], params["emb_ln_b"],
                               params["w1"], params["b1"])                 # hoisted (B, E)
    mapping_flat = run_controller(h_bf16, params["w2_ce_bf16"],
                                  params["b2_ce"], vmem_budget=budget)     # (B, C*E) bf16
    mapping_bce = mapping_flat.reshape(B, C, -1)                           # (B, C, E) == W_b.T
    return run_fusion(feat_btc, params["feat_ln_g"], params["feat_ln_b"],
                      mapping_bce, out_dtype=out_dtype, vmem_budget=budget)


def lvpg_forward(feat_tbc, tgt_lang_toks, params, *, out_dtype=None):
    """PyTorch-layout API: feat (T, B, C) -> (T, B, E). Prefer the _btc entry
    point upstream to avoid the boundary transposes entirely."""
    feat_btc = jnp.transpose(feat_tbc, (1, 0, 2))
    out_bte = lvpg_forward_btc(feat_btc, tgt_lang_toks, params, out_dtype=out_dtype)
    return jnp.transpose(out_bte, (1, 0, 2))


# --------------------------------------------------------------------------
# Pure-JAX f32 reference (for verification).
# --------------------------------------------------------------------------
def lvpg_reference(feat_tbc, tgt_lang_toks, params):
    def ln(x, g, b):
        mu = x.mean(-1, keepdims=True)
        var = ((x - mu) ** 2).mean(-1, keepdims=True)
        return (x - mu) / jnp.sqrt(var + EPS) * g + b

    T, B, C = feat_tbc.shape
    E = params["emb_ln_g"].shape[0]
    feat_ln = ln(feat_tbc, params["feat_ln_g"], params["feat_ln_b"])
    emb = ln(params["embed_tokens"][tgt_lang_toks], params["emb_ln_g"], params["emb_ln_b"])
    h = jnp.maximum(emb @ params["w1"] + params["b1"], 0.0)
    m = jnp.maximum(h @ params["w2"] + params["b2"], 0.0)
    W = m.reshape(B, E, C)
    return jnp.einsum("tbc,bec->tbe", feat_ln, W)


if __name__ == "__main__":
    # Small shapes consistent with the module's forward.
    T, B = 8, 2           # seq, batch  (feat.shape[0], feat.shape[1])
    C, E = 16, 32         # feat_channel, embed_dim
    VOCAB = 10

    key = jax.random.PRNGKey(0)
    ks = jax.random.split(key, 8)

    params = {
        "embed_tokens": jax.random.normal(ks[0], (VOCAB, E), jnp.float32),
        "emb_ln_g": jnp.ones((E,), jnp.float32),
        "emb_ln_b": jnp.zeros((E,), jnp.float32),
        "feat_ln_g": jnp.ones((C,), jnp.float32),
        "feat_ln_b": jnp.zeros((C,), jnp.float32),
        # Linear weights stored pre-transposed (in_features, out_features).
        "w1": jax.random.normal(ks[1], (E, E), jnp.float32) * 0.1,
        "b1": jax.random.normal(ks[2], (E,), jnp.float32) * 0.1,
        "w2": jax.random.normal(ks[3], (E, C * E), jnp.float32) * 0.1,
        "b2": jax.random.normal(ks[4], (C * E,), jnp.float32) * 0.1,
    }
    params = prepare_params(params)   # one-time load-time reorder + bf16 cast

    feat = jax.random.normal(ks[5], (T, B, C), jnp.float32)
    tgt_lang_toks = jnp.array([3, 7], dtype=jnp.int32)

    out = lvpg_forward(feat, tgt_lang_toks, params)
    out = jax.block_until_ready(out)

    ref = lvpg_reference(feat, tgt_lang_toks, params)
    assert out.shape == (T, B, E), out.shape
    # bf16-streamed heavy operands with f32 accumulation -> loosened tolerance.
    assert jnp.allclose(out, ref, rtol=2e-2, atol=2e-2), float(jnp.abs(out - ref).max())

    print("KERNEL_OK")
</pallas_src>

<mosaic_0001>
module attributes {stable_mosaic.version = 11 : i64} {
  func.func @controller_kernel(%arg0: i32, %arg1: memref<2x32xbf16, #tpu.memory_space<vmem>>, %arg2: memref<32x512xbf16, #tpu.memory_space<vmem>>, %arg3: memref<1x512xf32, #tpu.memory_space<vmem>>, %arg4: memref<2x512xbf16, #tpu.memory_space<vmem>>) attributes {dimension_semantics = [#tpu.dimension_semantics<parallel>], iteration_bounds = array<i64: 1>, scalar_prefetch = 0 : i64, scratch_operands = 0 : i64, tpu.core_type = #tpu.core_type<tc>, window_params = [{pipeline_mode = #tpu.pipeline_mode<synchronous>, transform_indices = @transform_0, window_bounds = array<i64: 2, 32>}, {transform_indices = @transform_1, window_bounds = array<i64: 32, 512>}, {transform_indices = @transform_2, window_bounds = array<i64: 1, 512>}, {transform_indices = @transform_3, window_bounds = array<i64: 2, 512>}]} {
    %c0 = arith.constant 0 : index
    %c0_0 = arith.constant 0 : index
    %0 = vector.load %arg1[%c0, %c0_0] : memref<2x32xbf16, #tpu.memory_space<vmem>>, vector<2x32xbf16>
    %c0_1 = arith.constant 0 : index
    %c0_2 = arith.constant 0 : index
    %1 = vector.load %arg2[%c0_1, %c0_2] : memref<32x512xbf16, #tpu.memory_space<vmem>>, vector<32x512xbf16>
    %cst = arith.constant dense<0.000000e+00> : vector<2x512xf32>
    %2 = tpu.matmul %0, %1, %cst {dimension_numbers = #tpu.dot_dimension_numbers<[1], [0], [0], [1], [0, 0, 1, 1], [], []>} : vector<2x32xbf16>, vector<32x512xbf16>, vector<2x512xf32> -> vector<2x512xf32>
    %c0_3 = arith.constant 0 : index
    %c0_4 = arith.constant 0 : index
    %3 = vector.load %arg3[%c0_3, %c0_4] : memref<1x512xf32, #tpu.memory_space<vmem>>, vector<1x512xf32>
    %4 = vector.broadcast %3 : vector<1x512xf32> to vector<2x512xf32>
    %5 = arith.addf %2, %4 : vector<2x512xf32>
    %cst_5 = arith.constant 0.000000e+00 : f32
    %6 = vector.broadcast %cst_5 : f32 to vector<2x512xf32>
    %7 = arith.maximumf %5, %6 : vector<2x512xf32>
    %8 = arith.truncf %7 : vector<2x512xf32> to vector<2x512xbf16>
    %c0_6 = arith.constant 0 : index
    %c0_7 = arith.constant 0 : index
    %9 = vector.load %arg4[%c0_6, %c0_7] : memref<2x512xbf16, #tpu.memory_space<vmem>>, vector<2x512xbf16>
    tpu.vector_store %arg4[%c0_6, %c0_7], %8 {strides = array<i32>} : memref<2x512xbf16, #tpu.memory_space<vmem>>, vector<2x512xbf16>,
    return
  }
  func.func @transform_0(%arg0: i32) -> (i32, i32) {
    %c0_i32 = arith.constant 0 : i32
    %c0_i32_0 = arith.constant 0 : i32
    %c0_i32_1 = arith.constant 0 : i32
    return %c0_i32, %c0_i32_0 : i32, i32
  }
  func.func @transform_1(%arg0: i32) -> (i32, i32) {
    %c0_i32 = arith.constant 0 : i32
    %c0_i32_0 = arith.constant 0 : i32
    return %c0_i32, %arg0 : i32, i32
  }
  func.func @transform_2(%arg0: i32) -> (i32, i32) {
    %c0_i32 = arith.constant 0 : i32
    %c0_i32_0 = arith.constant 0 : i32
    return %c0_i32, %arg0 : i32, i32
  }
  func.func @transform_3(%arg0: i32) -> (i32, i32) {
    %c0_i32 = arith.constant 0 : i32
    %c0_i32_0 = arith.constant 0 : i32
    return %c0_i32, %arg0 : i32, i32
  }
}

</mosaic_0001>

<llo_original>
// kernel: tpu_custom_call.1
$region0: #{tpu_custom_call.1}
  #allocation0 [shape = 'u32[]', space=smem, size = 0x4, offset = 0x4, fixed_abs, tag = 'smem constant byte address 0x4 - core index']
  #allocation1 [shape = 'u32[72,128]{1,0:T(1,128)}', space=vmem, size = 0x9000, scoped, tag = 'internal scratch']
  %s0 = inlined_call_operand.hbm [shape: bf16[2,32], index: 0, kind: input, shape index: {}]
  %s1 = inlined_call_operand.hbm [shape: bf16[32,512], index: 1, kind: input, shape index: {}]
  %s2 = inlined_call_operand.hbm [shape: f32[1,512], index: 2, kind: input, shape index: {}]
  %s3 = inlined_call_operand.hbm [shape: bf16[2,512], index: 3, kind: output, shape index: {}]
  %s4 = sld [smem:[#allocation0]]
  $region34: #{tpu_custom_call.1} parent=0
    _
  %s6 = ssub.s32 1, %s4
  %s7 = scalar_select 0, %s6, %s4
  $region1: #{tpu_custom_call.1} parent=0
    #allocation2 [shape = 'u8[512]{0}', space=vmem, size = 0x400, scoped, tag = 'input window, operand 0, single buffered']
    #allocation3 [shape = 's32[1]{0}', space=sflag, size = 0x4, scoped, tag = 'scoped memory for tpu_custom_call.1']
    #allocation4 [shape = 's32[1]{0}', space=sflag, size = 0x4, scoped, tag = 'scoped memory for tpu_custom_call.1']
    #allocation5 [shape = 'u8[32768]{0}', space=vmem, size = 0x8000, scoped, tag = 'input window, operand 1, single buffered']
    #allocation6 [shape = 's32[1]{0}', space=sflag, size = 0x4, scoped, tag = 'scoped memory for tpu_custom_call.1']
    #allocation7 [shape = 'u8[2048]{0}', space=vmem, size = 0x800, scoped, tag = 'input window, operand 2, single buffered']
    #allocation8 [shape = 'u8[2048]{0}', space=vmem, size = 0x800, scoped, tag = 'output window, operand 0, single buffered']
    %8 = vsyncpa [#allocation3], 0
    %9 = vsyncpa [#allocation6], 0
    %10 = vsyncpa [#allocation4], 0
    // Predicated region
    $region2: #{tpu_custom_call.1} parent=1 // pred_check
      _
    $region3: #{tpu_custom_call.1} parent=1 // pred_check_branch
      %12 = sbr.rel (0) target = $region5
    $region4: #{tpu_custom_call.1} parent=1 // pred_region
      %14 = vsyncadd [#allocation3], 0
      %s16 = sshll.u32 %s0, 4
      %s17 = int_to_ptr.hbm [resolvable:$true] %s16
      %s18 = sshll.u32 [#allocation2], 4
      %s19 = int_to_ptr.vmem [resolvable:$true] %s18
      %21 = dma.hbm_to_vmem [thread:$0]  %s17, 16, %s19, [#allocation3]
    $region5: #{tpu_custom_call.1} parent=1 // pred_fallthru
      _
    // Predicated region
    $region6: #{tpu_custom_call.1} parent=1 // pred_check
      _
    $region7: #{tpu_custom_call.1} parent=1 // pred_check_branch
      %23 = sbr.rel (0) target = $region9
    $region8: #{tpu_custom_call.1} parent=1 // pred_region
      %25 = vsyncadd [#allocation6], 0
      %s26 = sshll.u32 %s1, 4
      %s27 = int_to_ptr.hbm [resolvable:$true] %s26
      %s28 = sshll.u32 [#allocation5], 4
      %s29 = int_to_ptr.vmem [resolvable:$true] %s28
      %34 = dma.hbm_to_vmem [thread:$0]  %s27, 1024, %s29, [#allocation6], 256, 256, 16
    $region9: #{tpu_custom_call.1} parent=1 // pred_fallthru
      _
    // Predicated region
    $region10: #{tpu_custom_call.1} parent=1 // pred_check
      _
    $region11: #{tpu_custom_call.1} parent=1 // pred_check_branch
      %36 = sbr.rel (0) target = $region13
    $region12: #{tpu_custom_call.1} parent=1 // pred_region
      %38 = vsyncadd [#allocation6], 0
      %s40 = sshll.u32 %s2, 4
      %s41 = int_to_ptr.hbm [resolvable:$true] %s40
      %s42 = sshll.u32 [#allocation7], 4
      %s43 = int_to_ptr.vmem [resolvable:$true] %s42
      %45 = dma.hbm_to_vmem [thread:$0]  %s41, 64, %s43, [#allocation6]
    $region13: #{tpu_custom_call.1} parent=1 // pred_fallthru
      _
    // Predicated region
    $region14: #{tpu_custom_call.1} parent=1 // pred_check
      _
    $region15: #{tpu_custom_call.1} parent=1 // pred_check_branch
      %47 = sbr.rel (0) target = $region17
    $region16: #{tpu_custom_call.1} parent=1 // pred_region
      %49 = dma.done [#allocation3], 16
    $region17: #{tpu_custom_call.1} parent=1 // pred_fallthru
      _
    // Predicated region
    $region18: #{tpu_custom_call.1} parent=1 // pred_check
      _
    $region19: #{tpu_custom_call.1} parent=1 // pred_check_branch
      %51 = sbr.rel (0) target = $region21
    $region20: #{tpu_custom_call.1} parent=1 // pred_region
      %53 = dma.done [#allocation6], 1024
    $region21: #{tpu_custom_call.1} parent=1 // pred_fallthru
      _
    // Predicated region
    $region22: #{tpu_custom_call.1} parent=1 // pred_check
      _
    $region23: #{tpu_custom_call.1} parent=1 // pred_check_branch
      %55 = sbr.rel (0) target = $region25
    $region24: #{tpu_custom_call.1} parent=1 // pred_region
      %57 = dma.done [#allocation6], 64
    $region25: #{tpu_custom_call.1} parent=1 // pred_fallthru
      _
    %v59 = vld [vmem:[#allocation2] sm:$0x1]
    %v60 = vld [vmem:[#allocation5] sm:$0xff]
    %v61 = vld [vmem:[#allocation5 + $0x8] sm:$0xff]
    %v62 = vld [vmem:[#allocation5 + $0x10] sm:$0xff]
    %v63 = vld [vmem:[#allocation5 + $0x18] sm:$0xff]
    %v64 = vld [vmem:[#allocation5 + $0x20] sm:$0xff]
    %v65 = vld [vmem:[#allocation5 + $0x28] sm:$0xff]
    %v66 = vld [vmem:[#allocation5 + $0x30] sm:$0xff]
    %v67 = vld [vmem:[#allocation5 + $0x38] sm:$0xff]
    %v68 = vld [vmem:[#allocation7] sm:$0xf]
    %v70 = vperm.slane %v68, 0
    %v71 = vperm.slane %v68, 1
    %v72 = vperm.slane %v68, 2
    %v73 = vperm.slane %v68, 3
    %v86 = vunpack.c.l.b16 %v60
    %v87 = vunpack.c.h.b16 %v60
    %v88 = vunpack.c.l.b16 %v61
    %v89 = vunpack.c.h.b16 %v61
    %v90 = vunpack.c.l.b16 %v62
    %v91 = vunpack.c.h.b16 %v62
    %v92 = vunpack.c.l.b16 %v63
    %v93 = vunpack.c.h.b16 %v63
    %v94 = vunpack.c.l.b16 %v64
    %v95 = vunpack.c.h.b16 %v64
    %v96 = vunpack.c.l.b16 %v65
    %v97 = vunpack.c.h.b16 %v65
    %v98 = vunpack.c.l.b16 %v66
    %v99 = vunpack.c.h.b16 %v66
    %v100 = vunpack.c.l.b16 %v67
    %v101 = vunpack.c.h.b16 %v67
    %v102 = vpack.c.b16 %v90, %v86
    %v103 = vpack.c.b16 %v91, %v87
    %v104 = vpack.c.b16 %v92, %v88
    %v105 = vpack.c.b16 %v93, %v89
    %v106 = vpack.c.b16 %v98, %v94
    %v107 = vpack.c.b16 %v99, %v95
    %v108 = vpack.c.b16 %v100, %v96
    %v109 = vpack.c.b16 %v101, %v97
    %vm118 = vcmask 261120
    %v120 = vsel %vm118, %v59, 0
    %122 = vmatpush.bf16.msra.mxu0 0
    %123 = vmatpush.bf16.msra.mxu0 0
    %124 = vmatpush.bf16.msra.mxu0 0
    %125 = vmatpush.bf16.msra.mxu0 0
    %126 = vmatpush.bf16.msra.mxu0 0
    %127 = vmatpush.bf16.msra.mxu0 0
    %128 = vmatpush.bf16.msra.mxu0 %v106
    %129 = vmatpush.bf16.msra.mxu0 %v102
    %130 = vmatmul.bf16.gmra.mxu0 %v120
    %v131 = vpop.f32.mrf.mxu0
    %v132 = vadd.f32 %v70, %v131
    %v133 = vpop.f32.mrf.mxu0
    %134 = vdwg.mxu0
    %135 = vmatpush.bf16.msra.mxu0 0
    %136 = vmatpush.bf16.msra.mxu0 0
    %137 = vmatpush.bf16.msra.mxu0 0
    %138 = vmatpush.bf16.msra.mxu0 0
    %139 = vmatpush.bf16.msra.mxu0 0
    %140 = vmatpush.bf16.msra.mxu0 0
    %141 = vmatpush.bf16.msra.mxu0 %v107
    %142 = vmatpush.bf16.msra.mxu0 %v103
    %143 = vmatmul.bf16.gmra.mxu0 %v120
    %v144 = vpop.f32.mrf.mxu0
    %v145 = vadd.f32 %v71, %v144
    %v146 = vpop.f32.mrf.mxu0
    %147 = vdwg.mxu0
    %148 = vmatpush.bf16.msra.mxu0 0
    %149 = vmatpush.bf16.msra.mxu0 0
    %150 = vmatpush.bf16.msra.mxu0 0
    %151 = vmatpush.bf16.msra.mxu0 0
    %152 = vmatpush.bf16.msra.mxu0 0
    %153 = vmatpush.bf16.msra.mxu0 0
    %154 = vmatpush.bf16.msra.mxu0 %v108
    %155 = vmatpush.bf16.msra.mxu0 %v104
    %156 = vmatmul.bf16.gmra.mxu0 %v120
    %v157 = vpop.f32.mrf.mxu0
    %v158 = vadd.f32 %v72, %v157
    %v159 = vpop.f32.mrf.mxu0
    %160 = vdwg.mxu0
    %161 = vmatpush.bf16.msra.mxu0 0
    %162 = vmatpush.bf16.msra.mxu0 0
    %163 = vmatpush.bf16.msra.mxu0 0
    %164 = vmatpush.bf16.msra.mxu0 0
    %165 = vmatpush.bf16.msra.mxu0 0
    %166 = vmatpush.bf16.msra.mxu0 0
    %167 = vmatpush.bf16.msra.mxu0 %v109
    %168 = vmatpush.bf16.msra.mxu0 %v105
    %169 = vmatmul.bf16.gmra.mxu0 %v120
    %v170 = vpop.f32.mrf.mxu0
    %v171 = vadd.f32 %v73, %v170
    %v172 = vpop.f32.mrf.mxu0
    %173 = vdwg.mxu0
    %v174 = vmax.f32 %v132, 0.0
    %v175 = vmax.f32 %v145, 0.0
    %v176 = vmax.f32 %v158, 0.0
    %v177 = vmax.f32 %v171, 0.0
    %v178 = vpack.c.bf16 %v175, %v174
    %v179 = vpack.c.bf16 %v177, %v176
    %v182 = vrot.slane %v178, 3
    %v183 = vrot.slane %v179, 6
    %v184 = vrot.slane %v179, 1
    %vm185 = vcmask 1040384
    %v188 = vsel %vm185, %v178, %v182
    %vm189 = vcmask 1042434
    %v192 = vsel %vm189, %v183, %v184
    %vm193 = vcmask 1041408
    %v194 = vsel %vm193, %v188, %v192
    %196 = vst [vmem:[#allocation8] sm:$0xf] %v194
    // Predicated region
    $region26: #{tpu_custom_call.1} parent=1 // pred_check
      _
    $region27: #{tpu_custom_call.1} parent=1 // pred_check_branch
      %198 = sbr.rel (0) target = $region29
    $region28: #{tpu_custom_call.1} parent=1 // pred_region
      %200 = vsyncadd [#allocation4], 0
      %s202 = sshll.u32 [#allocation8], 4
      %s203 = int_to_ptr.vmem [resolvable:$true] %s202
      %s204 = sshll.u32 %s3, 4
      %s205 = int_to_ptr.hbm [resolvable:$true] %s204
      %207 = dma.vmem_to_hbm [thread:$0]  %s203, 64, %s205, [#allocation4]
    $region29: #{tpu_custom_call.1} parent=1 // pred_fallthru
      _
    // Predicated region
    $region30: #{tpu_custom_call.1} parent=1 // pred_check
      _
    $region31: #{tpu_custom_call.1} parent=1 // pred_check_branch
      %209 = sbr.rel (0) target = $region33
    $region32: #{tpu_custom_call.1} parent=1 // pred_region
      %211 = dma.done [#allocation4], 64
    $region33: #{tpu_custom_call.1} parent=1 // pred_fallthru
      _
    %212 = vsyncpa [#allocation3], 1
    %213 = vsyncpa [#allocation6], 1
    %214 = vsyncpa [#allocation4], 1

</llo_original>
